<compile_context>
chip_gen: v5e
topology: v5e:2x2
jax: 0.10.0
libtpu: 0.0.40
codegen_flags: <defaults>
</compile_context>

<pallas_src>
import functools

import jax
import jax.numpy as jnp
from jax.experimental import pallas as pl
from jax.experimental.pallas import tpu as pltpu

BN_EPS = 1e-5
LRELU_SLOPE = 0.2
H = W = 4
P = H * W  # 16 spatial positions of the 4x4 map


def _round_up(x, m):
    return ((x + m - 1) // m) * m


def _vmem():
    # shapes here are tiny -> whole arrays resident in VMEM, no grid
    return pl.BlockSpec(memory_space=pltpu.MemorySpace.VMEM)


# ---------------------------------------------------------------------------
# Kernel helpers
# ---------------------------------------------------------------------------
def _heads_dot(feat, wh_ref, bh_ref, bp, c1):
    """Merged TF-conv + Linear head.

    feat rows are ordered (p = h*4+w, b):  feat[p*bp + b, c].
    wh rows are ordered p*c1 + c, columns are [tf | imp | zero pad to 128k].
    out[b, n] = sum_p feat[p*bp + b, :] @ wh[p*c1:(p+1)*c1, n] + bias[n]
    """
    npad = bh_ref.shape[1]
    acc = jnp.zeros((bp, npad), jnp.float32)
    for p in range(P):  # static unroll: 16 small MXU pushes, all in vregs
        acc = acc + jnp.dot(feat[p * bp:(p + 1) * bp, :],
                            wh_ref[p * c1:(p + 1) * c1, :],
                            preferred_element_type=jnp.float32)
    return acc + bh_ref[...]


def _make_fused_kernel(bp, c1):
    def kernel(pats_ref, w1_ref, shift_ref, wh_ref, bh_ref, out_ref):
        # conv3x3(+pad 1) as one im2col matmul.  BN scale pre-folded into the
        # w1 columns, bias+BN shift pre-folded into `shift`.
        # Dropout2d(0.5) is identity in eval mode.
        acc = jnp.dot(pats_ref[...], w1_ref[...],
                      preferred_element_type=jnp.float32)        # (P*bp, c1)
        acc = acc + shift_ref[...]
        feat = jnp.where(acc > 0, acc, LRELU_SLOPE * acc)        # LeakyReLU
        # fused heads: one lane-dense (bp, Npad) output, unmasked stores
        out_ref[...] = _heads_dot(feat, wh_ref, bh_ref, bp, c1)
    return kernel


def _make_heads_kernel(bp, c1):
    def kernel(feat_ref, wh_ref, bh_ref, out_ref):
        out_ref[...] = _heads_dot(feat_ref[...], wh_ref, bh_ref, bp, c1)
    return kernel


# ---------------------------------------------------------------------------
# Wrapper (jitted: weight reorders / BN folding / padding constant-fold)
# ---------------------------------------------------------------------------
@functools.partial(jax.jit,
                   static_argnames=("ndf", "nef", "imp_dim", "bcondition"))
def d_get_logits_forward(h_code, c_code, params, *, ndf, nef, imp_dim,
                         bcondition=True):
    B = h_code.shape[0]
    C1 = ndf * 4
    Bp = _round_up(max(B, 8), 8)             # full sublane tiles
    Npad = _round_up(1 + imp_dim, 128)       # lane-dense merged head output

    # --- merged head weights: rows ordered (h, w, c) == p*C1 + c -----------
    w_tf = jnp.transpose(params["w_tf"], (2, 3, 1, 0)).reshape(P * C1, 1)
    w_imp = jnp.transpose(params["w_imp"].reshape(imp_dim, C1, H, W),
                          (2, 3, 1, 0)).reshape(P * C1, imp_dim)
    wh = jnp.concatenate([w_tf, w_imp], axis=1)
    wh = jnp.pad(wh, ((0, 0), (0, Npad - 1 - imp_dim)))
    bh = jnp.concatenate([params["b_tf"], params["b_imp"]]).reshape(1, -1)
    bh = jnp.pad(bh, ((0, 0), (0, Npad - 1 - imp_dim)))

    if bcondition and c_code is not None:
        Cin = C1 + nef
        Kpad = _round_up(9 * Cin, 128)

        # fold bias + BatchNorm(eval) into scale/shift; fold scale into w1
        scale = params["bn_gamma"] * jax.lax.rsqrt(params["bn_var"] + BN_EPS)
        shift = ((params["b1"] - params["bn_mean"]) * scale
                 + params["bn_beta"]).reshape(1, C1)
        w1 = jnp.transpose(params["w1"], (2, 3, 1, 0)).reshape(9 * Cin, C1)
        w1 = w1 * scale[None, :]
        w1 = jnp.pad(w1, ((0, Kpad - 9 * Cin), (0, 0)))

        # im2col, rows ordered (h, w, b); batch padded to Bp, K padded to Kpad
        cc = jnp.broadcast_to(c_code.reshape(B, nef, 1, 1), (B, nef, H, W))
        x = jnp.transpose(jnp.concatenate([h_code, cc], axis=1), (0, 2, 3, 1))
        x = jnp.pad(x, ((0, Bp - B), (0, 0), (0, 0), (0, 0)))    # (Bp,4,4,Cin)
        xp = jnp.pad(x, ((0, 0), (1, 1), (1, 1), (0, 0)))        # (Bp,6,6,Cin)
        pats = jnp.stack([xp[:, ky:ky + H, kx:kx + W, :]
                          for ky in range(3) for kx in range(3)], axis=3)
        pats = jnp.transpose(pats, (1, 2, 0, 3, 4)).reshape(P * Bp, 9 * Cin)
        pats = jnp.pad(pats, ((0, 0), (0, Kpad - 9 * Cin)))

        out = pl.pallas_call(
            _make_fused_kernel(Bp, C1),
            out_shape=jax.ShapeDtypeStruct((Bp, Npad), jnp.float32),
            in_specs=[_vmem()] * 5,
            out_specs=_vmem(),
        )(pats, w1, shift, wh, bh)
    else:
        # unconditioned head: merged heads matmul applied to h_code directly
        feat = jnp.transpose(h_code, (2, 3, 0, 1))               # (4,4,B,C1)
        feat = jnp.pad(feat, ((0, 0), (0, 0), (0, Bp - B), (0, 0)))
        feat = feat.reshape(P * Bp, C1).astype(jnp.float32)
        out = pl.pallas_call(
            _make_heads_kernel(Bp, C1),
            out_shape=jax.ShapeDtypeStruct((Bp, Npad), jnp.float32),
            in_specs=[_vmem()] * 3,
            out_specs=_vmem(),
        )(feat, wh, bh)

    # torch.squeeze semantics on each head output
    return jnp.squeeze(out[:B, 0:1]), jnp.squeeze(out[:B, 1:1 + imp_dim])


# ---------------------------------------------------------------------------
# Plain-JAX references (NCHW, lax.conv) for correctness cross-checks
# ---------------------------------------------------------------------------
def reference_cond(h_code, c_code, params, *, nef):
    B = h_code.shape[0]
    dn = ("NCHW", "OIHW", "NCHW")
    cc = jnp.broadcast_to(c_code.reshape(B, nef, 1, 1), (B, nef, H, W))
    hc = jnp.concatenate([h_code, cc], axis=1)
    y = jax.lax.conv_general_dilated(hc, params["w1"], (1, 1), ((1, 1), (1, 1)),
                                     dimension_numbers=dn,
                                     precision=jax.lax.Precision.HIGHEST)
    y = y + params["b1"][None, :, None, None]
    inv = jax.lax.rsqrt(params["bn_var"] + BN_EPS)
    y = ((y - params["bn_mean"][None, :, None, None])
         * (inv * params["bn_gamma"])[None, :, None, None]
         + params["bn_beta"][None, :, None, None])
    y = jnp.where(y > 0, y, LRELU_SLOPE * y)
    tf = jax.lax.conv_general_dilated(y, params["w_tf"], (4, 4), "VALID",
                                      dimension_numbers=dn,
                                      precision=jax.lax.Precision.HIGHEST)
    tf = tf + params["b_tf"][None, :, None, None]
    imp = jnp.dot(y.reshape(B, -1), params["w_imp"].T,
                  precision=jax.lax.Precision.HIGHEST) + params["b_imp"]
    return jnp.squeeze(tf), jnp.squeeze(imp)


def reference_uncond(h_code, params):
    B = h_code.shape[0]
    dn = ("NCHW", "OIHW", "NCHW")
    tf = jax.lax.conv_general_dilated(h_code, params["w_tf"], (4, 4), "VALID",
                                      dimension_numbers=dn,
                                      precision=jax.lax.Precision.HIGHEST)
    tf = tf + params["b_tf"][None, :, None, None]
    imp = jnp.dot(h_code.reshape(B, -1), params["w_imp"].T,
                  precision=jax.lax.Precision.HIGHEST) + params["b_imp"]
    return jnp.squeeze(tf), jnp.squeeze(imp)


if __name__ == "__main__":
    # small, module-consistent shapes
    ndf, nef, imp_dim = 8, 16, 10
    B = 2
    C1 = ndf * 4

    key = jax.random.PRNGKey(0)
    ks = jax.random.split(key, 12)
    Cin = C1 + nef
    params = {
        "w1":       0.1 * jax.random.normal(ks[0], (C1, Cin, 3, 3), jnp.float32),
        "b1":       0.1 * jax.random.normal(ks[1], (C1,), jnp.float32),
        "bn_gamma": 1.0 + 0.1 * jax.random.normal(ks[2], (C1,), jnp.float32),
        "bn_beta":  0.1 * jax.random.normal(ks[3], (C1,), jnp.float32),
        "bn_mean":  0.1 * jax.random.normal(ks[4], (C1,), jnp.float32),
        "bn_var":   0.5 + jnp.abs(jax.random.normal(ks[5], (C1,), jnp.float32)),
        "w_tf":     0.1 * jax.random.normal(ks[6], (1, C1, 4, 4), jnp.float32),
        "b_tf":     0.1 * jax.random.normal(ks[7], (1,), jnp.float32),
        "w_imp":    0.1 * jax.random.normal(ks[8], (imp_dim, C1 * 4 * 4), jnp.float32),
        "b_imp":    0.1 * jax.random.normal(ks[9], (imp_dim,), jnp.float32),
    }
    h_code = jax.random.normal(ks[10], (B, C1, 4, 4), jnp.float32)
    c_code = jax.random.normal(ks[11], (B, nef), jnp.float32)

    # conditioned head (conv3x3 + Dropout(eval) + BN(eval) + LReLU + heads)
    x_tf, x_imp = d_get_logits_forward(h_code, c_code, params,
                                       ndf=ndf, nef=nef, imp_dim=imp_dim,
                                       bcondition=True)
    x_tf, x_imp = jax.block_until_ready((x_tf, x_imp))
    r_tf, r_imp = reference_cond(h_code, c_code, params, nef=nef)
    assert x_tf.shape == (B,) and x_imp.shape == (B, imp_dim)
    assert jnp.allclose(x_tf, r_tf, atol=3e-2, rtol=3e-2)
    assert jnp.allclose(x_imp, r_imp, atol=3e-2, rtol=3e-2)

    # unconditioned head (heads applied directly to h_code)
    u_tf, u_imp = d_get_logits_forward(h_code, None, params,
                                       ndf=ndf, nef=nef, imp_dim=imp_dim,
                                       bcondition=False)
    u_tf, u_imp = jax.block_until_ready((u_tf, u_imp))
    ru_tf, ru_imp = reference_uncond(h_code, params)
    assert jnp.allclose(u_tf, ru_tf, atol=3e-2, rtol=3e-2)
    assert jnp.allclose(u_imp, ru_imp, atol=3e-2, rtol=3e-2)

    print("KERNEL_OK")
</pallas_src>

<mosaic_0001>
module attributes {stable_mosaic.version = 11 : i64} {
  func.func @kernel(%arg0: memref<128x512xf32, #tpu.memory_space<vmem>>, %arg1: memref<512x32xf32, #tpu.memory_space<vmem>>, %arg2: memref<1x32xf32, #tpu.memory_space<vmem>>, %arg3: memref<512x128xf32, #tpu.memory_space<vmem>>, %arg4: memref<1x128xf32, #tpu.memory_space<vmem>>, %arg5: memref<8x128xf32, #tpu.memory_space<vmem>>) attributes {dimension_semantics = [], scalar_prefetch = 0 : i64, scratch_operands = 0 : i64, tpu.core_type = #tpu.core_type<tc>} {
    %c0 = arith.constant 0 : index
    %c0_0 = arith.constant 0 : index
    %0 = vector.load %arg0[%c0, %c0_0] : memref<128x512xf32, #tpu.memory_space<vmem>>, vector<128x512xf32>
    %c0_1 = arith.constant 0 : index
    %c0_2 = arith.constant 0 : index
    %1 = vector.load %arg1[%c0_1, %c0_2] : memref<512x32xf32, #tpu.memory_space<vmem>>, vector<512x32xf32>
    %cst = arith.constant dense<0.000000e+00> : vector<128x32xf32>
    %2 = tpu.matmul %0, %1, %cst {dimension_numbers = #tpu.dot_dimension_numbers<[1], [0], [0], [1], [0, 0, 1, 1], [], []>} : vector<128x512xf32>, vector<512x32xf32>, vector<128x32xf32> -> vector<128x32xf32>
    %c0_3 = arith.constant 0 : index
    %c0_4 = arith.constant 0 : index
    %3 = vector.load %arg2[%c0_3, %c0_4] : memref<1x32xf32, #tpu.memory_space<vmem>>, vector<1x32xf32>
    %4 = vector.broadcast %3 : vector<1x32xf32> to vector<128x32xf32>
    %5 = arith.addf %2, %4 : vector<128x32xf32>
    %cst_5 = arith.constant 0.000000e+00 : f32
    %6 = vector.broadcast %cst_5 : f32 to vector<128x32xf32>
    %7 = arith.cmpf ogt, %5, %6 : vector<128x32xf32>
    %cst_6 = arith.constant 2.000000e-01 : f32
    %8 = vector.broadcast %cst_6 : f32 to vector<128x32xf32>
    %9 = arith.mulf %8, %5 : vector<128x32xf32>
    %10 = arith.select %7, %5, %9 : vector<128x32xi1>, vector<128x32xf32>
    %cst_7 = arith.constant 0.000000e+00 : f32
    %11 = vector.broadcast %cst_7 : f32 to vector<8x128xf32>
    %12 = vector.extract_strided_slice %10 {offsets = [0, 0], sizes = [8, 32], strides = [1, 1]} : vector<128x32xf32> to vector<8x32xf32>
    %c0_8 = arith.constant 0 : index
    %c0_9 = arith.constant 0 : index
    %13 = vector.load %arg3[%c0_8, %c0_9] : memref<512x128xf32, #tpu.memory_space<vmem>>, vector<32x128xf32>
    %cst_10 = arith.constant dense<0.000000e+00> : vector<8x128xf32>
    %14 = tpu.matmul %12, %13, %cst_10 {dimension_numbers = #tpu.dot_dimension_numbers<[1], [0], [0], [1], [0, 0, 1, 1], [], []>} : vector<8x32xf32>, vector<32x128xf32>, vector<8x128xf32> -> vector<8x128xf32>
    %15 = arith.addf %11, %14 : vector<8x128xf32>
    %16 = vector.extract_strided_slice %10 {offsets = [8, 0], sizes = [8, 32], strides = [1, 1]} : vector<128x32xf32> to vector<8x32xf32>
    %c32 = arith.constant 32 : index
    %c0_11 = arith.constant 0 : index
    %17 = vector.load %arg3[%c32, %c0_11] : memref<512x128xf32, #tpu.memory_space<vmem>>, vector<32x128xf32>
    %cst_12 = arith.constant dense<0.000000e+00> : vector<8x128xf32>
    %18 = tpu.matmul %16, %17, %cst_12 {dimension_numbers = #tpu.dot_dimension_numbers<[1], [0], [0], [1], [0, 0, 1, 1], [], []>} : vector<8x32xf32>, vector<32x128xf32>, vector<8x128xf32> -> vector<8x128xf32>
    %19 = arith.addf %15, %18 : vector<8x128xf32>
    %20 = vector.extract_strided_slice %10 {offsets = [16, 0], sizes = [8, 32], strides = [1, 1]} : vector<128x32xf32> to vector<8x32xf32>
    %c64 = arith.constant 64 : index
    %c0_13 = arith.constant 0 : index
    %21 = vector.load %arg3[%c64, %c0_13] : memref<512x128xf32, #tpu.memory_space<vmem>>, vector<32x128xf32>
    %cst_14 = arith.constant dense<0.000000e+00> : vector<8x128xf32>
    %22 = tpu.matmul %20, %21, %cst_14 {dimension_numbers = #tpu.dot_dimension_numbers<[1], [0], [0], [1], [0, 0, 1, 1], [], []>} : vector<8x32xf32>, vector<32x128xf32>, vector<8x128xf32> -> vector<8x128xf32>
    %23 = arith.addf %19, %22 : vector<8x128xf32>
    %24 = vector.extract_strided_slice %10 {offsets = [24, 0], sizes = [8, 32], strides = [1, 1]} : vector<128x32xf32> to vector<8x32xf32>
    %c96 = arith.constant 96 : index
    %c0_15 = arith.constant 0 : index
    %25 = vector.load %arg3[%c96, %c0_15] : memref<512x128xf32, #tpu.memory_space<vmem>>, vector<32x128xf32>
    %cst_16 = arith.constant dense<0.000000e+00> : vector<8x128xf32>
    %26 = tpu.matmul %24, %25, %cst_16 {dimension_numbers = #tpu.dot_dimension_numbers<[1], [0], [0], [1], [0, 0, 1, 1], [], []>} : vector<8x32xf32>, vector<32x128xf32>, vector<8x128xf32> -> vector<8x128xf32>
    %27 = arith.addf %23, %26 : vector<8x128xf32>
    %28 = vector.extract_strided_slice %10 {offsets = [32, 0], sizes = [8, 32], strides = [1, 1]} : vector<128x32xf32> to vector<8x32xf32>
    %c128 = arith.constant 128 : index
    %c0_17 = arith.constant 0 : index
    %29 = vector.load %arg3[%c128, %c0_17] : memref<512x128xf32, #tpu.memory_space<vmem>>, vector<32x128xf32>
    %cst_18 = arith.constant dense<0.000000e+00> : vector<8x128xf32>
    %30 = tpu.matmul %28, %29, %cst_18 {dimension_numbers = #tpu.dot_dimension_numbers<[1], [0], [0], [1], [0, 0, 1, 1], [], []>} : vector<8x32xf32>, vector<32x128xf32>, vector<8x128xf32> -> vector<8x128xf32>
    %31 = arith.addf %27, %30 : vector<8x128xf32>
    %32 = vector.extract_strided_slice %10 {offsets = [40, 0], sizes = [8, 32], strides = [1, 1]} : vector<128x32xf32> to vector<8x32xf32>
    %c160 = arith.constant 160 : index
    %c0_19 = arith.constant 0 : index
    %33 = vector.load %arg3[%c160, %c0_19] : memref<512x128xf32, #tpu.memory_space<vmem>>, vector<32x128xf32>
    %cst_20 = arith.constant dense<0.000000e+00> : vector<8x128xf32>
    %34 = tpu.matmul %32, %33, %cst_20 {dimension_numbers = #tpu.dot_dimension_numbers<[1], [0], [0], [1], [0, 0, 1, 1], [], []>} : vector<8x32xf32>, vector<32x128xf32>, vector<8x128xf32> -> vector<8x128xf32>
    %35 = arith.addf %31, %34 : vector<8x128xf32>
    %36 = vector.extract_strided_slice %10 {offsets = [48, 0], sizes = [8, 32], strides = [1, 1]} : vector<128x32xf32> to vector<8x32xf32>
    %c192 = arith.constant 192 : index
    %c0_21 = arith.constant 0 : index
    %37 = vector.load %arg3[%c192, %c0_21] : memref<512x128xf32, #tpu.memory_space<vmem>>, vector<32x128xf32>
    %cst_22 = arith.constant dense<0.000000e+00> : vector<8x128xf32>
    %38 = tpu.matmul %36, %37, %cst_22 {dimension_numbers = #tpu.dot_dimension_numbers<[1], [0], [0], [1], [0, 0, 1, 1], [], []>} : vector<8x32xf32>, vector<32x128xf32>, vector<8x128xf32> -> vector<8x128xf32>
    %39 = arith.addf %35, %38 : vector<8x128xf32>
    %40 = vector.extract_strided_slice %10 {offsets = [56, 0], sizes = [8, 32], strides = [1, 1]} : vector<128x32xf32> to vector<8x32xf32>
    %c224 = arith.constant 224 : index
    %c0_23 = arith.constant 0 : index
    %41 = vector.load %arg3[%c224, %c0_23] : memref<512x128xf32, #tpu.memory_space<vmem>>, vector<32x128xf32>
    %cst_24 = arith.constant dense<0.000000e+00> : vector<8x128xf32>
    %42 = tpu.matmul %40, %41, %cst_24 {dimension_numbers = #tpu.dot_dimension_numbers<[1], [0], [0], [1], [0, 0, 1, 1], [], []>} : vector<8x32xf32>, vector<32x128xf32>, vector<8x128xf32> -> vector<8x128xf32>
    %43 = arith.addf %39, %42 : vector<8x128xf32>
    %44 = vector.extract_strided_slice %10 {offsets = [64, 0], sizes = [8, 32], strides = [1, 1]} : vector<128x32xf32> to vector<8x32xf32>
    %c256 = arith.constant 256 : index
    %c0_25 = arith.constant 0 : index
    %45 = vector.load %arg3[%c256, %c0_25] : memref<512x128xf32, #tpu.memory_space<vmem>>, vector<32x128xf32>
    %cst_26 = arith.constant dense<0.000000e+00> : vector<8x128xf32>
    %46 = tpu.matmul %44, %45, %cst_26 {dimension_numbers = #tpu.dot_dimension_numbers<[1], [0], [0], [1], [0, 0, 1, 1], [], []>} : vector<8x32xf32>, vector<32x128xf32>, vector<8x128xf32> -> vector<8x128xf32>
    %47 = arith.addf %43, %46 : vector<8x128xf32>
    %48 = vector.extract_strided_slice %10 {offsets = [72, 0], sizes = [8, 32], strides = [1, 1]} : vector<128x32xf32> to vector<8x32xf32>
    %c288 = arith.constant 288 : index
    %c0_27 = arith.constant 0 : index
    %49 = vector.load %arg3[%c288, %c0_27] : memref<512x128xf32, #tpu.memory_space<vmem>>, vector<32x128xf32>
    %cst_28 = arith.constant dense<0.000000e+00> : vector<8x128xf32>
    %50 = tpu.matmul %48, %49, %cst_28 {dimension_numbers = #tpu.dot_dimension_numbers<[1], [0], [0], [1], [0, 0, 1, 1], [], []>} : vector<8x32xf32>, vector<32x128xf32>, vector<8x128xf32> -> vector<8x128xf32>
    %51 = arith.addf %47, %50 : vector<8x128xf32>
    %52 = vector.extract_strided_slice %10 {offsets = [80, 0], sizes = [8, 32], strides = [1, 1]} : vector<128x32xf32> to vector<8x32xf32>
    %c320 = arith.constant 320 : index
    %c0_29 = arith.constant 0 : index
    %53 = vector.load %arg3[%c320, %c0_29] : memref<512x128xf32, #tpu.memory_space<vmem>>, vector<32x128xf32>
    %cst_30 = arith.constant dense<0.000000e+00> : vector<8x128xf32>
    %54 = tpu.matmul %52, %53, %cst_30 {dimension_numbers = #tpu.dot_dimension_numbers<[1], [0], [0], [1], [0, 0, 1, 1], [], []>} : vector<8x32xf32>, vector<32x128xf32>, vector<8x128xf32> -> vector<8x128xf32>
    %55 = arith.addf %51, %54 : vector<8x128xf32>
    %56 = vector.extract_strided_slice %10 {offsets = [88, 0], sizes = [8, 32], strides = [1, 1]} : vector<128x32xf32> to vector<8x32xf32>
    %c352 = arith.constant 352 : index
    %c0_31 = arith.constant 0 : index
    %57 = vector.load %arg3[%c352, %c0_31] : memref<512x128xf32, #tpu.memory_space<vmem>>, vector<32x128xf32>
    %cst_32 = arith.constant dense<0.000000e+00> : vector<8x128xf32>
    %58 = tpu.matmul %56, %57, %cst_32 {dimension_numbers = #tpu.dot_dimension_numbers<[1], [0], [0], [1], [0, 0, 1, 1], [], []>} : vector<8x32xf32>, vector<32x128xf32>, vector<8x128xf32> -> vector<8x128xf32>
    %59 = arith.addf %55, %58 : vector<8x128xf32>
    %60 = vector.extract_strided_slice %10 {offsets = [96, 0], sizes = [8, 32], strides = [1, 1]} : vector<128x32xf32> to vector<8x32xf32>
    %c384 = arith.constant 384 : index
    %c0_33 = arith.constant 0 : index
    %61 = vector.load %arg3[%c384, %c0_33] : memref<512x128xf32, #tpu.memory_space<vmem>>, vector<32x128xf32>
    %cst_34 = arith.constant dense<0.000000e+00> : vector<8x128xf32>
    %62 = tpu.matmul %60, %61, %cst_34 {dimension_numbers = #tpu.dot_dimension_numbers<[1], [0], [0], [1], [0, 0, 1, 1], [], []>} : vector<8x32xf32>, vector<32x128xf32>, vector<8x128xf32> -> vector<8x128xf32>
    %63 = arith.addf %59, %62 : vector<8x128xf32>
    %64 = vector.extract_strided_slice %10 {offsets = [104, 0], sizes = [8, 32], strides = [1, 1]} : vector<128x32xf32> to vector<8x32xf32>
    %c416 = arith.constant 416 : index
    %c0_35 = arith.constant 0 : index
    %65 = vector.load %arg3[%c416, %c0_35] : memref<512x128xf32, #tpu.memory_space<vmem>>, vector<32x128xf32>
    %cst_36 = arith.constant dense<0.000000e+00> : vector<8x128xf32>
    %66 = tpu.matmul %64, %65, %cst_36 {dimension_numbers = #tpu.dot_dimension_numbers<[1], [0], [0], [1], [0, 0, 1, 1], [], []>} : vector<8x32xf32>, vector<32x128xf32>, vector<8x128xf32> -> vector<8x128xf32>
    %67 = arith.addf %63, %66 : vector<8x128xf32>
    %68 = vector.extract_strided_slice %10 {offsets = [112, 0], sizes = [8, 32], strides = [1, 1]} : vector<128x32xf32> to vector<8x32xf32>
    %c448 = arith.constant 448 : index
    %c0_37 = arith.constant 0 : index
    %69 = vector.load %arg3[%c448, %c0_37] : memref<512x128xf32, #tpu.memory_space<vmem>>, vector<32x128xf32>
    %cst_38 = arith.constant dense<0.000000e+00> : vector<8x128xf32>
    %70 = tpu.matmul %68, %69, %cst_38 {dimension_numbers = #tpu.dot_dimension_numbers<[1], [0], [0], [1], [0, 0, 1, 1], [], []>} : vector<8x32xf32>, vector<32x128xf32>, vector<8x128xf32> -> vector<8x128xf32>
    %71 = arith.addf %67, %70 : vector<8x128xf32>
    %72 = vector.extract_strided_slice %10 {offsets = [120, 0], sizes = [8, 32], strides = [1, 1]} : vector<128x32xf32> to vector<8x32xf32>
    %c480 = arith.constant 480 : index
    %c0_39 = arith.constant 0 : index
    %73 = vector.load %arg3[%c480, %c0_39] : memref<512x128xf32, #tpu.memory_space<vmem>>, vector<32x128xf32>
    %cst_40 = arith.constant dense<0.000000e+00> : vector<8x128xf32>
    %74 = tpu.matmul %72, %73, %cst_40 {dimension_numbers = #tpu.dot_dimension_numbers<[1], [0], [0], [1], [0, 0, 1, 1], [], []>} : vector<8x32xf32>, vector<32x128xf32>, vector<8x128xf32> -> vector<8x128xf32>
    %75 = arith.addf %71, %74 : vector<8x128xf32>
    %c0_41 = arith.constant 0 : index
    %c0_42 = arith.constant 0 : index
    %76 = vector.load %arg4[%c0_41, %c0_42] : memref<1x128xf32, #tpu.memory_space<vmem>>, vector<1x128xf32>
    %77 = vector.broadcast %76 : vector<1x128xf32> to vector<8x128xf32>
    %78 = arith.addf %75, %77 : vector<8x128xf32>
    %c0_43 = arith.constant 0 : index
    %c0_44 = arith.constant 0 : index
    %79 = vector.load %arg5[%c0_43, %c0_44] : memref<8x128xf32, #tpu.memory_space<vmem>>, vector<8x128xf32>
    tpu.vector_store %arg5[%c0_43, %c0_44], %78 {strides = array<i32>} : memref<8x128xf32, #tpu.memory_space<vmem>>, vector<8x128xf32>,
    return
  }
}

</mosaic_0001>

<llo_original>
// kernel: d_get_logits_forward.1
$region0: #{d_get_logits_forward.1}
  #allocation0 [shape = 'u32[]', space=smem, size = 0x4, offset = 0x4, fixed_abs, tag = 'smem constant byte address 0x4 - core index']
  #allocation1 [shape = 'u32[72,128]{1,0:T(1,128)}', space=vmem, size = 0x9000, scoped, tag = 'internal scratch']
  %s0 = inlined_call_operand.vmem [shape: f32[128,512], index: 0, kind: input, shape index: {}]
  %s1 = inlined_call_operand.vmem [shape: f32[512,32], index: 1, kind: input, shape index: {}]
  %s2 = inlined_call_operand.vmem [shape: f32[1,32], index: 2, kind: input, shape index: {}]
  %s3 = inlined_call_operand.vmem [shape: f32[512,128], index: 3, kind: input, shape index: {}]
  %s4 = inlined_call_operand.vmem [shape: f32[1,128], index: 4, kind: input, shape index: {}]
  %s5 = inlined_call_operand.vmem [shape: f32[8,128], index: 5, kind: output, shape index: {}]
  %s6 = sld [smem:[#allocation0]]
  $region30: #{d_get_logits_forward.1} parent=0
    _
  %s8 = ssub.s32 1, %s6
  %s9 = scalar_select 0, %s8, %s6
  // Predicated region
  $region2: #{d_get_logits_forward.1} parent=0 // pred_check
    _
  $region3: #{d_get_logits_forward.1} parent=0 // pred_check_branch
    %11 = sbr.rel (0) target = $region5
  $region4: #{d_get_logits_forward.1} parent=0 // pred_region
    _
  $region5: #{d_get_logits_forward.1} parent=0 // pred_fallthru
    _
  // Predicated region
  $region6: #{d_get_logits_forward.1} parent=0 // pred_check
    _
  $region7: #{d_get_logits_forward.1} parent=0 // pred_check_branch
    %13 = sbr.rel (0) target = $region9
  $region8: #{d_get_logits_forward.1} parent=0 // pred_region
    _
  $region9: #{d_get_logits_forward.1} parent=0 // pred_fallthru
    _
  // Predicated region
  $region10: #{d_get_logits_forward.1} parent=0 // pred_check
    _
  $region11: #{d_get_logits_forward.1} parent=0 // pred_check_branch
    %15 = sbr.rel (0) target = $region13
  $region12: #{d_get_logits_forward.1} parent=0 // pred_region
    _
  $region13: #{d_get_logits_forward.1} parent=0 // pred_fallthru
    _
  // Predicated region
  $region14: #{d_get_logits_forward.1} parent=0 // pred_check
    _
  $region15: #{d_get_logits_forward.1} parent=0 // pred_check_branch
    %17 = sbr.rel (0) target = $region17
  $region16: #{d_get_logits_forward.1} parent=0 // pred_region
    _
  $region17: #{d_get_logits_forward.1} parent=0 // pred_fallthru
    _
  // Predicated region
  $region18: #{d_get_logits_forward.1} parent=0 // pred_check
    _
  $region19: #{d_get_logits_forward.1} parent=0 // pred_check_branch
    %19 = sbr.rel (0) target = $region21
  $region20: #{d_get_logits_forward.1} parent=0 // pred_region
    _
  $region21: #{d_get_logits_forward.1} parent=0 // pred_fallthru
    _
  %v20 = vld [vmem:[%s0] sm:$0xff]
  %v21 = vld [vmem:[%s0 + $0x8] sm:$0xff]
  %v22 = vld [vmem:[%s0 + $0x10] sm:$0xff]
  %v23 = vld [vmem:[%s0 + $0x18] sm:$0xff]
  %v24 = vld [vmem:[%s0 + $0x20] sm:$0xff]
  %v25 = vld [vmem:[%s0 + $0x28] sm:$0xff]
  %v26 = vld [vmem:[%s0 + $0x30] sm:$0xff]
  %v27 = vld [vmem:[%s0 + $0x38] sm:$0xff]
  %v28 = vld [vmem:[%s0 + $0x40] sm:$0xff]
  %v29 = vld [vmem:[%s0 + $0x48] sm:$0xff]
  %v30 = vld [vmem:[%s0 + $0x50] sm:$0xff]
  %v31 = vld [vmem:[%s0 + $0x58] sm:$0xff]
  %v32 = vld [vmem:[%s0 + $0x60] sm:$0xff]
  %v33 = vld [vmem:[%s0 + $0x68] sm:$0xff]
  %v34 = vld [vmem:[%s0 + $0x70] sm:$0xff]
  %v35 = vld [vmem:[%s0 + $0x78] sm:$0xff]
  %v36 = vld [vmem:[%s0 + $0x80] sm:$0xff]
  %v37 = vld [vmem:[%s0 + $0x88] sm:$0xff]
  %v38 = vld [vmem:[%s0 + $0x90] sm:$0xff]
  %v39 = vld [vmem:[%s0 + $0x98] sm:$0xff]
  %v40 = vld [vmem:[%s0 + $0xa0] sm:$0xff]
  %v41 = vld [vmem:[%s0 + $0xa8] sm:$0xff]
  %v42 = vld [vmem:[%s0 + $0xb0] sm:$0xff]
  %v43 = vld [vmem:[%s0 + $0xb8] sm:$0xff]
  %v44 = vld [vmem:[%s0 + $0xc0] sm:$0xff]
  %v45 = vld [vmem:[%s0 + $0xc8] sm:$0xff]
  %v46 = vld [vmem:[%s0 + $0xd0] sm:$0xff]
  %v47 = vld [vmem:[%s0 + $0xd8] sm:$0xff]
  %v48 = vld [vmem:[%s0 + $0xe0] sm:$0xff]
  %v49 = vld [vmem:[%s0 + $0xe8] sm:$0xff]
  %v50 = vld [vmem:[%s0 + $0xf0] sm:$0xff]
  %v51 = vld [vmem:[%s0 + $0xf8] sm:$0xff]
  %v52 = vld [vmem:[%s0 + $0x100] sm:$0xff]
  %v53 = vld [vmem:[%s0 + $0x108] sm:$0xff]
  %v54 = vld [vmem:[%s0 + $0x110] sm:$0xff]
  %v55 = vld [vmem:[%s0 + $0x118] sm:$0xff]
  %v56 = vld [vmem:[%s0 + $0x120] sm:$0xff]
  %v57 = vld [vmem:[%s0 + $0x128] sm:$0xff]
  %v58 = vld [vmem:[%s0 + $0x130] sm:$0xff]
  %v59 = vld [vmem:[%s0 + $0x138] sm:$0xff]
  %v60 = vld [vmem:[%s0 + $0x140] sm:$0xff]
  %v61 = vld [vmem:[%s0 + $0x148] sm:$0xff]
  %v62 = vld [vmem:[%s0 + $0x150] sm:$0xff]
  %v63 = vld [vmem:[%s0 + $0x158] sm:$0xff]
  %v64 = vld [vmem:[%s0 + $0x160] sm:$0xff]
  %v65 = vld [vmem:[%s0 + $0x168] sm:$0xff]
  %v66 = vld [vmem:[%s0 + $0x170] sm:$0xff]
  %v67 = vld [vmem:[%s0 + $0x178] sm:$0xff]
  %v68 = vld [vmem:[%s0 + $0x180] sm:$0xff]
  %v69 = vld [vmem:[%s0 + $0x188] sm:$0xff]
  %v70 = vld [vmem:[%s0 + $0x190] sm:$0xff]
  %v71 = vld [vmem:[%s0 + $0x198] sm:$0xff]
  %v72 = vld [vmem:[%s0 + $0x1a0] sm:$0xff]
  %v73 = vld [vmem:[%s0 + $0x1a8] sm:$0xff]
  %v74 = vld [vmem:[%s0 + $0x1b0] sm:$0xff]
  %v75 = vld [vmem:[%s0 + $0x1b8] sm:$0xff]
  %v76 = vld [vmem:[%s0 + $0x1c0] sm:$0xff]
  %v77 = vld [vmem:[%s0 + $0x1c8] sm:$0xff]
  %v78 = vld [vmem:[%s0 + $0x1d0] sm:$0xff]
  %v79 = vld [vmem:[%s0 + $0x1d8] sm:$0xff]
  %v80 = vld [vmem:[%s0 + $0x1e0] sm:$0xff]
  %v81 = vld [vmem:[%s0 + $0x1e8] sm:$0xff]
  %v82 = vld [vmem:[%s0 + $0x1f0] sm:$0xff]
  %v83 = vld [vmem:[%s0 + $0x1f8] sm:$0xff]
  %v84 = vld [vmem:[%s1] sm:$0xff]
  %v85 = vld [vmem:[%s1 + $0x8] sm:$0xff]
  %v86 = vld [vmem:[%s1 + $0x10] sm:$0xff]
  %v87 = vld [vmem:[%s1 + $0x18] sm:$0xff]
  %v88 = vld [vmem:[%s1 + $0x20] sm:$0xff]
  %v89 = vld [vmem:[%s1 + $0x28] sm:$0xff]
  %v90 = vld [vmem:[%s1 + $0x30] sm:$0xff]
  %v91 = vld [vmem:[%s1 + $0x38] sm:$0xff]
  %v92 = vld [vmem:[%s1 + $0x40] sm:$0xff]
  %v93 = vld [vmem:[%s1 + $0x48] sm:$0xff]
  %v94 = vld [vmem:[%s1 + $0x50] sm:$0xff]
  %v95 = vld [vmem:[%s1 + $0x58] sm:$0xff]
  %v96 = vld [vmem:[%s1 + $0x60] sm:$0xff]
  %v97 = vld [vmem:[%s1 + $0x68] sm:$0xff]
  %v98 = vld [vmem:[%s1 + $0x70] sm:$0xff]
  %v99 = vld [vmem:[%s1 + $0x78] sm:$0xff]
  %v100 = vld [vmem:[%s1 + $0x80] sm:$0xff]
  %v101 = vld [vmem:[%s1 + $0x88] sm:$0xff]
  %v102 = vld [vmem:[%s1 + $0x90] sm:$0xff]
  %v103 = vld [vmem:[%s1 + $0x98] sm:$0xff]
  %v104 = vld [vmem:[%s1 + $0xa0] sm:$0xff]
  %v105 = vld [vmem:[%s1 + $0xa8] sm:$0xff]
  %v106 = vld [vmem:[%s1 + $0xb0] sm:$0xff]
  %v107 = vld [vmem:[%s1 + $0xb8] sm:$0xff]
  %v108 = vld [vmem:[%s1 + $0xc0] sm:$0xff]
  %v109 = vld [vmem:[%s1 + $0xc8] sm:$0xff]
  %v110 = vld [vmem:[%s1 + $0xd0] sm:$0xff]
  %v111 = vld [vmem:[%s1 + $0xd8] sm:$0xff]
  %v112 = vld [vmem:[%s1 + $0xe0] sm:$0xff]
  %v113 = vld [vmem:[%s1 + $0xe8] sm:$0xff]
  %v114 = vld [vmem:[%s1 + $0xf0] sm:$0xff]
  %v115 = vld [vmem:[%s1 + $0xf8] sm:$0xff]
  %v116 = vld [vmem:[%s1 + $0x100] sm:$0xff]
  %v117 = vld [vmem:[%s1 + $0x108] sm:$0xff]
  %v118 = vld [vmem:[%s1 + $0x110] sm:$0xff]
  %v119 = vld [vmem:[%s1 + $0x118] sm:$0xff]
  %v120 = vld [vmem:[%s1 + $0x120] sm:$0xff]
  %v121 = vld [vmem:[%s1 + $0x128] sm:$0xff]
  %v122 = vld [vmem:[%s1 + $0x130] sm:$0xff]
  %v123 = vld [vmem:[%s1 + $0x138] sm:$0xff]
  %v124 = vld [vmem:[%s1 + $0x140] sm:$0xff]
  %v125 = vld [vmem:[%s1 + $0x148] sm:$0xff]
  %v126 = vld [vmem:[%s1 + $0x150] sm:$0xff]
  %v127 = vld [vmem:[%s1 + $0x158] sm:$0xff]
  %v128 = vld [vmem:[%s1 + $0x160] sm:$0xff]
  %v129 = vld [vmem:[%s1 + $0x168] sm:$0xff]
  %v130 = vld [vmem:[%s1 + $0x170] sm:$0xff]
  %v131 = vld [vmem:[%s1 + $0x178] sm:$0xff]
  %v132 = vld [vmem:[%s1 + $0x180] sm:$0xff]
  %v133 = vld [vmem:[%s1 + $0x188] sm:$0xff]
  %v134 = vld [vmem:[%s1 + $0x190] sm:$0xff]
  %v135 = vld [vmem:[%s1 + $0x198] sm:$0xff]
  %v136 = vld [vmem:[%s1 + $0x1a0] sm:$0xff]
  %v137 = vld [vmem:[%s1 + $0x1a8] sm:$0xff]
  %v138 = vld [vmem:[%s1 + $0x1b0] sm:$0xff]
  %v139 = vld [vmem:[%s1 + $0x1b8] sm:$0xff]
  %v140 = vld [vmem:[%s1 + $0x1c0] sm:$0xff]
  %v141 = vld [vmem:[%s1 + $0x1c8] sm:$0xff]
  %v142 = vld [vmem:[%s1 + $0x1d0] sm:$0xff]
  %v143 = vld [vmem:[%s1 + $0x1d8] sm:$0xff]
  %v144 = vld [vmem:[%s1 + $0x1e0] sm:$0xff]
  %v145 = vld [vmem:[%s1 + $0x1e8] sm:$0xff]
  %v146 = vld [vmem:[%s1 + $0x1f0] sm:$0xff]
  %v147 = vld [vmem:[%s1 + $0x1f8] sm:$0xff]
  %v148 = vld [vmem:[%s2] sm:$0x1]
  %v150 = vperm.slane %v148, 0
  %152 = vmatpush.msra.mxu0 %v99
  %153 = vmatpush.msra.mxu0 %v98
  %154 = vmatpush.msra.mxu0 %v97
  %155 = vmatpush.msra.mxu0 %v96
  %156 = vmatpush.msra.mxu0 %v95
  %157 = vmatpush.msra.mxu0 %v94
  %158 = vmatpush.msra.mxu0 %v93
  %159 = vmatpush.msra.mxu0 %v92
  %160 = vmatpush.msra.mxu0 %v91
  %161 = vmatpush.msra.mxu0 %v90
  %162 = vmatpush.msra.mxu0 %v89
  %163 = vmatpush.msra.mxu0 %v88
  %164 = vmatpush.msra.mxu0 %v87
  %165 = vmatpush.msra.mxu0 %v86
  %166 = vmatpush.msra.mxu0 %v85
  %167 = vmatpush.msra.mxu0 %v84
  %168 = vmatmul.f32.gmra.mxu0 %v20
  %v169 = vpop.f32.mrf.mxu0
  %v170 = vadd.f32 %v150, %v169
  %171 = vmatmul.f32.gmra.mxu0 %v24
  %v172 = vpop.f32.mrf.mxu0
  %v173 = vadd.f32 %v150, %v172
  %174 = vmatmul.f32.gmra.mxu0 %v28
  %v175 = vpop.f32.mrf.mxu0
  %v176 = vadd.f32 %v150, %v175
  %177 = vmatmul.f32.gmra.mxu0 %v32
  %v178 = vpop.f32.mrf.mxu0
  %v179 = vadd.f32 %v150, %v178
  %180 = vmatmul.f32.gmra.mxu0 %v36
  %v181 = vpop.f32.mrf.mxu0
  %v182 = vadd.f32 %v150, %v181
  %183 = vmatmul.f32.gmra.mxu0 %v40
  %v184 = vpop.f32.mrf.mxu0
  %v185 = vadd.f32 %v150, %v184
  %186 = vmatmul.f32.gmra.mxu0 %v44
  %v187 = vpop.f32.mrf.mxu0
  %v188 = vadd.f32 %v150, %v187
  %189 = vmatmul.f32.gmra.mxu0 %v48
  %v190 = vpop.f32.mrf.mxu0
  %v191 = vadd.f32 %v150, %v190
  %192 = vmatmul.f32.gmra.mxu0 %v52
  %v193 = vpop.f32.mrf.mxu0
  %v194 = vadd.f32 %v150, %v193
  %195 = vmatmul.f32.gmra.mxu0 %v56
  %v196 = vpop.f32.mrf.mxu0
  %v197 = vadd.f32 %v150, %v196
  %198 = vmatmul.f32.gmra.mxu0 %v60
  %v199 = vpop.f32.mrf.mxu0
  %v200 = vadd.f32 %v150, %v199
  %201 = vmatmul.f32.gmra.mxu0 %v64
  %v202 = vpop.f32.mrf.mxu0
  %v203 = vadd.f32 %v150, %v202
  %204 = vmatmul.f32.gmra.mxu0 %v68
  %v205 = vpop.f32.mrf.mxu0
  %v206 = vadd.f32 %v150, %v205
  %207 = vmatmul.f32.gmra.mxu0 %v72
  %v208 = vpop.f32.mrf.mxu0
  %v209 = vadd.f32 %v150, %v208
  %210 = vmatmul.f32.gmra.mxu0 %v76
  %v211 = vpop.f32.mrf.mxu0
  %v212 = vadd.f32 %v150, %v211
  %213 = vmatmul.f32.gmra.mxu0 %v80
  %v214 = vpop.f32.mrf.mxu0
  %v215 = vadd.f32 %v150, %v214
  %216 = vdwg.mxu0
  %217 = vmatpush.msra.mxu0 %v115
  %218 = vmatpush.msra.mxu0 %v114
  %219 = vmatpush.msra.mxu0 %v113
  %220 = vmatpush.msra.mxu0 %v112
  %221 = vmatpush.msra.mxu0 %v111
  %222 = vmatpush.msra.mxu0 %v110
  %223 = vmatpush.msra.mxu0 %v109
  %224 = vmatpush.msra.mxu0 %v108
  %225 = vmatpush.msra.mxu0 %v107
  %226 = vmatpush.msra.mxu0 %v106
  %227 = vmatpush.msra.mxu0 %v105
  %228 = vmatpush.msra.mxu0 %v104
  %229 = vmatpush.msra.mxu0 %v103
  %230 = vmatpush.msra.mxu0 %v102
  %231 = vmatpush.msra.mxu0 %v101
  %232 = vmatpush.msra.mxu0 %v100
  %233 = vmatmul.f32.gmra.mxu0 %v21
  %v234 = vpop.f32.mrf.mxu0
  %v235 = vadd.f32 %v170, %v234
  %236 = vmatmul.f32.gmra.mxu0 %v25
  %v237 = vpop.f32.mrf.mxu0
  %v238 = vadd.f32 %v173, %v237
  %239 = vmatmul.f32.gmra.mxu0 %v29
  %v240 = vpop.f32.mrf.mxu0
  %v241 = vadd.f32 %v176, %v240
  %242 = vmatmul.f32.gmra.mxu0 %v33
  %v243 = vpop.f32.mrf.mxu0
  %v244 = vadd.f32 %v179, %v243
  %245 = vmatmul.f32.gmra.mxu0 %v37
  %v246 = vpop.f32.mrf.mxu0
  %v247 = vadd.f32 %v182, %v246
  %248 = vmatmul.f32.gmra.mxu0 %v41
  %v249 = vpop.f32.mrf.mxu0
  %v250 = vadd.f32 %v185, %v249
  %251 = vmatmul.f32.gmra.mxu0 %v45
  %v252 = vpop.f32.mrf.mxu0
  %v253 = vadd.f32 %v188, %v252
  %254 = vmatmul.f32.gmra.mxu0 %v49
  %v255 = vpop.f32.mrf.mxu0
  %v256 = vadd.f32 %v191, %v255
  %257 = vmatmul.f32.gmra.mxu0 %v53
  %v258 = vpop.f32.mrf.mxu0
  %v259 = vadd.f32 %v194, %v258
  %260 = vmatmul.f32.gmra.mxu0 %v57
  %v261 = vpop.f32.mrf.mxu0
  %v262 = vadd.f32 %v197, %v261
  %263 = vmatmul.f32.gmra.mxu0 %v61
  %v264 = vpop.f32.mrf.mxu0
  %v265 = vadd.f32 %v200, %v264
  %266 = vmatmul.f32.gmra.mxu0 %v65
  %v267 = vpop.f32.mrf.mxu0
  %v268 = vadd.f32 %v203, %v267
  %269 = vmatmul.f32.gmra.mxu0 %v69
  %v270 = vpop.f32.mrf.mxu0
  %v271 = vadd.f32 %v206, %v270
  %272 = vmatmul.f32.gmra.mxu0 %v73
  %v273 = vpop.f32.mrf.mxu0
  %v274 = vadd.f32 %v209, %v273
  %275 = vmatmul.f32.gmra.mxu0 %v77
  %v276 = vpop.f32.mrf.mxu0
  %v277 = vadd.f32 %v212, %v276
  %278 = vmatmul.f32.gmra.mxu0 %v81
  %v279 = vpop.f32.mrf.mxu0
  %v280 = vadd.f32 %v215, %v279
  %281 = vdwg.mxu0
  %282 = vmatpush.msra.mxu0 %v131
  %283 = vmatpush.msra.mxu0 %v130
  %284 = vmatpush.msra.mxu0 %v129
  %285 = vmatpush.msra.mxu0 %v128
  %286 = vmatpush.msra.mxu0 %v127
  %287 = vmatpush.msra.mxu0 %v126
  %288 = vmatpush.msra.mxu0 %v125
  %289 = vmatpush.msra.mxu0 %v124
  %290 = vmatpush.msra.mxu0 %v123
  %291 = vmatpush.msra.mxu0 %v122
  %292 = vmatpush.msra.mxu0 %v121
  %293 = vmatpush.msra.mxu0 %v120
  %294 = vmatpush.msra.mxu0 %v119
  %295 = vmatpush.msra.mxu0 %v118
  %296 = vmatpush.msra.mxu0 %v117
  %297 = vmatpush.msra.mxu0 %v116
  %298 = vmatmul.f32.gmra.mxu0 %v22
  %v299 = vpop.f32.mrf.mxu0
  %v300 = vadd.f32 %v235, %v299
  %301 = vmatmul.f32.gmra.mxu0 %v26
  %v302 = vpop.f32.mrf.mxu0
  %v303 = vadd.f32 %v238, %v302
  %304 = vmatmul.f32.gmra.mxu0 %v30
  %v305 = vpop.f32.mrf.mxu0
  %v306 = vadd.f32 %v241, %v305
  %307 = vmatmul.f32.gmra.mxu0 %v34
  %v308 = vpop.f32.mrf.mxu0
  %v309 = vadd.f32 %v244, %v308
  %310 = vmatmul.f32.gmra.mxu0 %v38
  %v311 = vpop.f32.mrf.mxu0
  %v312 = vadd.f32 %v247, %v311
  %313 = vmatmul.f32.gmra.mxu0 %v42
  %v314 = vpop.f32.mrf.mxu0
  %v315 = vadd.f32 %v250, %v314
  %316 = vmatmul.f32.gmra.mxu0 %v46
  %v317 = vpop.f32.mrf.mxu0
  %v318 = vadd.f32 %v253, %v317
  %319 = vmatmul.f32.gmra.mxu0 %v50
  %v320 = vpop.f32.mrf.mxu0
  %v321 = vadd.f32 %v256, %v320
  %322 = vmatmul.f32.gmra.mxu0 %v54
  %v323 = vpop.f32.mrf.mxu0
  %v324 = vadd.f32 %v259, %v323
  %325 = vmatmul.f32.gmra.mxu0 %v58
  %v326 = vpop.f32.mrf.mxu0
  %v327 = vadd.f32 %v262, %v326
  %328 = vmatmul.f32.gmra.mxu0 %v62
  %v329 = vpop.f32.mrf.mxu0
  %v330 = vadd.f32 %v265, %v329
  %331 = vmatmul.f32.gmra.mxu0 %v66
  %v332 = vpop.f32.mrf.mxu0
  %v333 = vadd.f32 %v268, %v332
  %334 = vmatmul.f32.gmra.mxu0 %v70
  %v335 = vpop.f32.mrf.mxu0
  %v336 = vadd.f32 %v271, %v335
  %337 = vmatmul.f32.gmra.mxu0 %v74
  %v338 = vpop.f32.mrf.mxu0
  %v339 = vadd.f32 %v274, %v338
  %340 = vmatmul.f32.gmra.mxu0 %v78
  %v341 = vpop.f32.mrf.mxu0
  %v342 = vadd.f32 %v277, %v341
  %343 = vmatmul.f32.gmra.mxu0 %v82
  %v344 = vpop.f32.mrf.mxu0
  %v345 = vadd.f32 %v280, %v344
  %346 = vdwg.mxu0
  %347 = vmatpush.msra.mxu0 %v147
  %348 = vmatpush.msra.mxu0 %v146
  %349 = vmatpush.msra.mxu0 %v145
  %350 = vmatpush.msra.mxu0 %v144
  %351 = vmatpush.msra.mxu0 %v143
  %352 = vmatpush.msra.mxu0 %v142
  %353 = vmatpush.msra.mxu0 %v141
  %354 = vmatpush.msra.mxu0 %v140
  %355 = vmatpush.msra.mxu0 %v139
  %356 = vmatpush.msra.mxu0 %v138
  %357 = vmatpush.msra.mxu0 %v137
  %358 = vmatpush.msra.mxu0 %v136
  %359 = vmatpush.msra.mxu0 %v135
  %360 = vmatpush.msra.mxu0 %v134
  %361 = vmatpush.msra.mxu0 %v133
  %362 = vmatpush.msra.mxu0 %v132
  %363 = vmatmul.f32.gmra.mxu0 %v23
  %v364 = vpop.f32.mrf.mxu0
  %v365 = vadd.f32 %v300, %v364
  %366 = vmatmul.f32.gmra.mxu0 %v27
  %v367 = vpop.f32.mrf.mxu0
  %v368 = vadd.f32 %v303, %v367
  %369 = vmatmul.f32.gmra.mxu0 %v31
  %v370 = vpop.f32.mrf.mxu0
  %v371 = vadd.f32 %v306, %v370
  %372 = vmatmul.f32.gmra.mxu0 %v35
  %v373 = vpop.f32.mrf.mxu0
  %v374 = vadd.f32 %v309, %v373
  %375 = vmatmul.f32.gmra.mxu0 %v39
  %v376 = vpop.f32.mrf.mxu0
  %v377 = vadd.f32 %v312, %v376
  %378 = vmatmul.f32.gmra.mxu0 %v43
  %v379 = vpop.f32.mrf.mxu0
  %v380 = vadd.f32 %v315, %v379
  %381 = vmatmul.f32.gmra.mxu0 %v47
  %v382 = vpop.f32.mrf.mxu0
  %v383 = vadd.f32 %v318, %v382
  %384 = vmatmul.f32.gmra.mxu0 %v51
  %v385 = vpop.f32.mrf.mxu0
  %v386 = vadd.f32 %v321, %v385
  %387 = vmatmul.f32.gmra.mxu0 %v55
  %v388 = vpop.f32.mrf.mxu0
  %v389 = vadd.f32 %v324, %v388
  %390 = vmatmul.f32.gmra.mxu0 %v59
  %v391 = vpop.f32.mrf.mxu0
  %v392 = vadd.f32 %v327, %v391
  %393 = vmatmul.f32.gmra.mxu0 %v63
  %v394 = vpop.f32.mrf.mxu0
  %v395 = vadd.f32 %v330, %v394
  %396 = vmatmul.f32.gmra.mxu0 %v67
  %v397 = vpop.f32.mrf.mxu0
  %v398 = vadd.f32 %v333, %v397
  %399 = vmatmul.f32.gmra.mxu0 %v71
  %v400 = vpop.f32.mrf.mxu0
  %v401 = vadd.f32 %v336, %v400
  %402 = vmatmul.f32.gmra.mxu0 %v75
  %v403 = vpop.f32.mrf.mxu0
  %v404 = vadd.f32 %v339, %v403
  %405 = vmatmul.f32.gmra.mxu0 %v79
  %v406 = vpop.f32.mrf.mxu0
  %v407 = vadd.f32 %v342, %v406
  %408 = vmatmul.f32.gmra.mxu0 %v83
  %v409 = vpop.f32.mrf.mxu0
  %v410 = vadd.f32 %v345, %v409
  %411 = vdwg.mxu0
  %vm412 = vcmp.gt.f32.partialorder %v365, 0.0
  %vm413 = vcmp.gt.f32.partialorder %v368, 0.0
  %vm414 = vcmp.gt.f32.partialorder %v371, 0.0
  %vm415 = vcmp.gt.f32.partialorder %v374, 0.0
  %vm416 = vcmp.gt.f32.partialorder %v377, 0.0
  %vm417 = vcmp.gt.f32.partialorder %v380, 0.0
  %vm418 = vcmp.gt.f32.partialorder %v383, 0.0
  %vm419 = vcmp.gt.f32.partialorder %v386, 0.0
  %vm420 = vcmp.gt.f32.partialorder %v389, 0.0
  %vm421 = vcmp.gt.f32.partialorder %v392, 0.0
  %vm422 = vcmp.gt.f32.partialorder %v395, 0.0
  %vm423 = vcmp.gt.f32.partialorder %v398, 0.0
  %vm424 = vcmp.gt.f32.partialorder %v401, 0.0
  %vm425 = vcmp.gt.f32.partialorder %v404, 0.0
  %vm426 = vcmp.gt.f32.partialorder %v407, 0.0
  %vm427 = vcmp.gt.f32.partialorder %v410, 0.0
  %v428 = vmul.f32 %v365, 0.2
  %v429 = vmul.f32 %v368, 0.2
  %v430 = vmul.f32 %v371, 0.2
  %v431 = vmul.f32 %v374, 0.2
  %v432 = vmul.f32 %v377, 0.2
  %v433 = vmul.f32 %v380, 0.2
  %v434 = vmul.f32 %v383, 0.2
  %v435 = vmul.f32 %v386, 0.2
  %v436 = vmul.f32 %v389, 0.2
  %v437 = vmul.f32 %v392, 0.2
  %v438 = vmul.f32 %v395, 0.2
  %v439 = vmul.f32 %v398, 0.2
  %v440 = vmul.f32 %v401, 0.2
  %v441 = vmul.f32 %v404, 0.2
  %v442 = vmul.f32 %v407, 0.2
  %v443 = vmul.f32 %v410, 0.2
  %v444 = vsel %vm412, %v365, %v428
  %v445 = vsel %vm413, %v368, %v429
  %v446 = vsel %vm414, %v371, %v430
  %v447 = vsel %vm415, %v374, %v431
  %v448 = vsel %vm416, %v377, %v432
  %v449 = vsel %vm417, %v380, %v433
  %v450 = vsel %vm418, %v383, %v434
  %v451 = vsel %vm419, %v386, %v435
  %v452 = vsel %vm420, %v389, %v436
  %v453 = vsel %vm421, %v392, %v437
  %v454 = vsel %vm422, %v395, %v438
  %v455 = vsel %vm423, %v398, %v439
  %v456 = vsel %vm424, %v401, %v440
  %v457 = vsel %vm425, %v404, %v441
  %v458 = vsel %vm426, %v407, %v442
  %v459 = vsel %vm427, %v410, %v443
  %v460 = vld [vmem:[%s3] sm:$0xff]
  %v461 = vld [vmem:[%s3 + $0x8] sm:$0xff]
  %v462 = vld [vmem:[%s3 + $0x10] sm:$0xff]
  %v463 = vld [vmem:[%s3 + $0x18] sm:$0xff]
  %v464 = vld [vmem:[%s3 + $0x20] sm:$0xff]
  %v465 = vld [vmem:[%s3 + $0x28] sm:$0xff]
  %v466 = vld [vmem:[%s3 + $0x30] sm:$0xff]
  %v467 = vld [vmem:[%s3 + $0x38] sm:$0xff]
  %vm468 = vcmask 261120
  %v470 = vsel %vm468, %v445, 0
  %472 = vmatpush.msra.mxu0 0.0
  %473 = vmatpush.msra.mxu0 0.0
  %474 = vmatpush.msra.mxu0 0.0
  %475 = vmatpush.msra.mxu0 0.0
  %476 = vmatpush.msra.mxu0 0.0
  %477 = vmatpush.msra.mxu0 0.0
  %478 = vmatpush.msra.mxu0 0.0
  %479 = vmatpush.msra.mxu0 0.0
  %480 = vmatpush.msra.mxu0 0.0
  %481 = vmatpush.msra.mxu0 0.0
  %482 = vmatpush.msra.mxu0 0.0
  %483 = vmatpush.msra.mxu0 0.0
  %484 = vmatpush.msra.mxu0 %v467
  %485 = vmatpush.msra.mxu0 %v466
  %486 = vmatpush.msra.mxu0 %v465
  %487 = vmatpush.msra.mxu0 %v464
  %488 = vmatmul.f32.gmra.mxu0 %v470
  %v489 = vpop.f32.mrf.mxu0
  %v490 = vadd.f32 0.0, %v489
  %491 = vdwg.mxu0
  %v493 = vsel %vm468, %v444, 0
  %495 = vmatpush.msra.mxu0 0.0
  %496 = vmatpush.msra.mxu0 0.0
  %497 = vmatpush.msra.mxu0 0.0
  %498 = vmatpush.msra.mxu0 0.0
  %499 = vmatpush.msra.mxu0 0.0
  %500 = vmatpush.msra.mxu0 0.0
  %501 = vmatpush.msra.mxu0 0.0
  %502 = vmatpush.msra.mxu0 0.0
  %503 = vmatpush.msra.mxu0 0.0
  %504 = vmatpush.msra.mxu0 0.0
  %505 = vmatpush.msra.mxu0 0.0
  %506 = vmatpush.msra.mxu0 0.0
  %507 = vmatpush.msra.mxu0 %v463
  %508 = vmatpush.msra.mxu0 %v462
  %509 = vmatpush.msra.mxu0 %v461
  %510 = vmatpush.msra.mxu0 %v460
  %511 = vmatmul.f32.gmra.mxu0 %v493
  %v512 = vpop.f32.mrf.mxu0
  %v513 = vadd.f32 %v490, %v512
  %514 = vdwg.mxu0
  %v515 = vld [vmem:[%s3 + $0x40] sm:$0xff]
  %v516 = vld [vmem:[%s3 + $0x48] sm:$0xff]
  %v517 = vld [vmem:[%s3 + $0x50] sm:$0xff]
  %v518 = vld [vmem:[%s3 + $0x58] sm:$0xff]
  %v520 = vsel %vm468, %v446, 0
  %522 = vmatpush.msra.mxu0 0.0
  %523 = vmatpush.msra.mxu0 0.0
  %524 = vmatpush.msra.mxu0 0.0
  %525 = vmatpush.msra.mxu0 0.0
  %526 = vmatpush.msra.mxu0 0.0
  %527 = vmatpush.msra.mxu0 0.0
  %528 = vmatpush.msra.mxu0 0.0
  %529 = vmatpush.msra.mxu0 0.0
  %530 = vmatpush.msra.mxu0 0.0
  %531 = vmatpush.msra.mxu0 0.0
  %532 = vmatpush.msra.mxu0 0.0
  %533 = vmatpush.msra.mxu0 0.0
  %534 = vmatpush.msra.mxu0 %v518
  %535 = vmatpush.msra.mxu0 %v517
  %536 = vmatpush.msra.mxu0 %v516
  %537 = vmatpush.msra.mxu0 %v515
  %538 = vmatmul.f32.gmra.mxu0 %v520
  %v539 = vpop.f32.mrf.mxu0
  %v540 = vadd.f32 0.0, %v539
  %541 = vdwg.mxu0
  %v542 = vadd.f32 %v513, %v540
  %v543 = vld [vmem:[%s3 + $0x60] sm:$0xff]
  %v544 = vld [vmem:[%s3 + $0x68] sm:$0xff]
  %v545 = vld [vmem:[%s3 + $0x70] sm:$0xff]
  %v546 = vld [vmem:[%s3 + $0x78] sm:$0xff]
  %v548 = vsel %vm468, %v447, 0
  %550 = vmatpush.msra.mxu0 0.0
  %551 = vmatpush.msra.mxu0 0.0
  %552 = vmatpush.msra.mxu0 0.0
  %553 = vmatpush.msra.mxu0 0.0
  %554 = vmatpush.msra.mxu0 0.0
  %555 = vmatpush.msra.mxu0 0.0
  %556 = vmatpush.msra.mxu0 0.0
  %557 = vmatpush.msra.mxu0 0.0
  %558 = vmatpush.msra.mxu0 0.0
  %559 = vmatpush.msra.mxu0 0.0
  %560 = vmatpush.msra.mxu0 0.0
  %561 = vmatpush.msra.mxu0 0.0
  %562 = vmatpush.msra.mxu0 %v546
  %563 = vmatpush.msra.mxu0 %v545
  %564 = vmatpush.msra.mxu0 %v544
  %565 = vmatpush.msra.mxu0 %v543
  %566 = vmatmul.f32.gmra.mxu0 %v548
  %v567 = vpop.f32.mrf.mxu0
  %v568 = vadd.f32 0.0, %v567
  %569 = vdwg.mxu0
  %v570 = vadd.f32 %v542, %v568
  %v571 = vld [vmem:[%s3 + $0x80] sm:$0xff]
  %v572 = vld [vmem:[%s3 + $0x88] sm:$0xff]
  %v573 = vld [vmem:[%s3 + $0x90] sm:$0xff]
  %v574 = vld [vmem:[%s3 + $0x98] sm:$0xff]
  %v576 = vsel %vm468, %v448, 0
  %578 = vmatpush.msra.mxu0 0.0
  %579 = vmatpush.msra.mxu0 0.0
  %580 = vmatpush.msra.mxu0 0.0
  %581 = vmatpush.msra.mxu0 0.0
  %582 = vmatpush.msra.mxu0 0.0
  %583 = vmatpush.msra.mxu0 0.0
  %584 = vmatpush.msra.mxu0 0.0
  %585 = vmatpush.msra.mxu0 0.0
  %586 = vmatpush.msra.mxu0 0.0
  %587 = vmatpush.msra.mxu0 0.0
  %588 = vmatpush.msra.mxu0 0.0
  %589 = vmatpush.msra.mxu0 0.0
  %590 = vmatpush.msra.mxu0 %v574
  %591 = vmatpush.msra.mxu0 %v573
  %592 = vmatpush.msra.mxu0 %v572
  %593 = vmatpush.msra.mxu0 %v571
  %594 = vmatmul.f32.gmra.mxu0 %v576
  %v595 = vpop.f32.mrf.mxu0
  %v596 = vadd.f32 0.0, %v595
  %597 = vdwg.mxu0
  %v598 = vadd.f32 %v570, %v596
  %v599 = vld [vmem:[%s3 + $0xa0] sm:$0xff]
  %v600 = vld [vmem:[%s3 + $0xa8] sm:$0xff]
  %v601 = vld [vmem:[%s3 + $0xb0] sm:$0xff]
  %v602 = vld [vmem:[%s3 + $0xb8] sm:$0xff]
  %v604 = vsel %vm468, %v449, 0
  %606 = vmatpush.msra.mxu0 0.0
  %607 = vmatpush.msra.mxu0 0.0
  %608 = vmatpush.msra.mxu0 0.0
  %609 = vmatpush.msra.mxu0 0.0
  %610 = vmatpush.msra.mxu0 0.0
  %611 = vmatpush.msra.mxu0 0.0
  %612 = vmatpush.msra.mxu0 0.0
  %613 = vmatpush.msra.mxu0 0.0
  %614 = vmatpush.msra.mxu0 0.0
  %615 = vmatpush.msra.mxu0 0.0
  %616 = vmatpush.msra.mxu0 0.0
  %617 = vmatpush.msra.mxu0 0.0
  %618 = vmatpush.msra.mxu0 %v602
  %619 = vmatpush.msra.mxu0 %v601
  %620 = vmatpush.msra.mxu0 %v600
  %621 = vmatpush.msra.mxu0 %v599
  %622 = vmatmul.f32.gmra.mxu0 %v604
  %v623 = vpop.f32.mrf.mxu0
  %v624 = vadd.f32 0.0, %v623
  %625 = vdwg.mxu0
  %v626 = vadd.f32 %v598, %v624
  %v627 = vld [vmem:[%s3 + $0xc0] sm:$0xff]
  %v628 = vld [vmem:[%s3 + $0xc8] sm:$0xff]
  %v629 = vld [vmem:[%s3 + $0xd0] sm:$0xff]
  %v630 = vld [vmem:[%s3 + $0xd8] sm:$0xff]
  %v632 = vsel %vm468, %v450, 0
  %634 = vmatpush.msra.mxu0 0.0
  %635 = vmatpush.msra.mxu0 0.0
  %636 = vmatpush.msra.mxu0 0.0
  %637 = vmatpush.msra.mxu0 0.0
  %638 = vmatpush.msra.mxu0 0.0
  %639 = vmatpush.msra.mxu0 0.0
  %640 = vmatpush.msra.mxu0 0.0
  %641 = vmatpush.msra.mxu0 0.0
  %642 = vmatpush.msra.mxu0 0.0
  %643 = vmatpush.msra.mxu0 0.0
  %644 = vmatpush.msra.mxu0 0.0
  %645 = vmatpush.msra.mxu0 0.0
  %646 = vmatpush.msra.mxu0 %v630
  %647 = vmatpush.msra.mxu0 %v629
  %648 = vmatpush.msra.mxu0 %v628
  %649 = vmatpush.msra.mxu0 %v627
  %650 = vmatmul.f32.gmra.mxu0 %v632
  %v651 = vpop.f32.mrf.mxu0
  %v652 = vadd.f32 0.0, %v651
  %653 = vdwg.mxu0
  %v654 = vadd.f32 %v626, %v652
  %v655 = vld [vmem:[%s3 + $0xe0] sm:$0xff]
  %v656 = vld [vmem:[%s3 + $0xe8] sm:$0xff]
  %v657 = vld [vmem:[%s3 + $0xf0] sm:$0xff]
  %v658 = vld [vmem:[%s3 + $0xf8] sm:$0xff]
  %v660 = vsel %vm468, %v451, 0
  %662 = vmatpush.msra.mxu0 0.0
  %663 = vmatpush.msra.mxu0 0.0
  %664 = vmatpush.msra.mxu0 0.0
  %665 = vmatpush.msra.mxu0 0.0
  %666 = vmatpush.msra.mxu0 0.0
  %667 = vmatpush.msra.mxu0 0.0
  %668 = vmatpush.msra.mxu0 0.0
  %669 = vmatpush.msra.mxu0 0.0
  %670 = vmatpush.msra.mxu0 0.0
  %671 = vmatpush.msra.mxu0 0.0
  %672 = vmatpush.msra.mxu0 0.0
  %673 = vmatpush.msra.mxu0 0.0
  %674 = vmatpush.msra.mxu0 %v658
  %675 = vmatpush.msra.mxu0 %v657
  %676 = vmatpush.msra.mxu0 %v656
  %677 = vmatpush.msra.mxu0 %v655
  %678 = vmatmul.f32.gmra.mxu0 %v660
  %v679 = vpop.f32.mrf.mxu0
  %v680 = vadd.f32 0.0, %v679
  %681 = vdwg.mxu0
  %v682 = vadd.f32 %v654, %v680
  %v683 = vld [vmem:[%s3 + $0x100] sm:$0xff]
  %v684 = vld [vmem:[%s3 + $0x108] sm:$0xff]
  %v685 = vld [vmem:[%s3 + $0x110] sm:$0xff]
  %v686 = vld [vmem:[%s3 + $0x118] sm:$0xff]
  %v688 = vsel %vm468, %v452, 0
  %690 = vmatpush.msra.mxu0 0.0
  %691 = vmatpush.msra.mxu0 0.0
  %692 = vmatpush.msra.mxu0 0.0
  %693 = vmatpush.msra.mxu0 0.0
  %694 = vmatpush.msra.mxu0 0.0
  %695 = vmatpush.msra.mxu0 0.0
  %696 = vmatpush.msra.mxu0 0.0
  %697 = vmatpush.msra.mxu0 0.0
  %698 = vmatpush.msra.mxu0 0.0
  %699 = vmatpush.msra.mxu0 0.0
  %700 = vmatpush.msra.mxu0 0.0
  %701 = vmatpush.msra.mxu0 0.0
  %702 = vmatpush.msra.mxu0 %v686
  %703 = vmatpush.msra.mxu0 %v685
  %704 = vmatpush.msra.mxu0 %v684
  %705 = vmatpush.msra.mxu0 %v683
  %706 = vmatmul.f32.gmra.mxu0 %v688
  %v707 = vpop.f32.mrf.mxu0
  %v708 = vadd.f32 0.0, %v707
  %709 = vdwg.mxu0
  %v710 = vadd.f32 %v682, %v708
  %v711 = vld [vmem:[%s3 + $0x120] sm:$0xff]
  %v712 = vld [vmem:[%s3 + $0x128] sm:$0xff]
  %v713 = vld [vmem:[%s3 + $0x130] sm:$0xff]
  %v714 = vld [vmem:[%s3 + $0x138] sm:$0xff]
  %v716 = vsel %vm468, %v453, 0
  %718 = vmatpush.msra.mxu0 0.0
  %719 = vmatpush.msra.mxu0 0.0
  %720 = vmatpush.msra.mxu0 0.0
  %721 = vmatpush.msra.mxu0 0.0
  %722 = vmatpush.msra.mxu0 0.0
  %723 = vmatpush.msra.mxu0 0.0
  %724 = vmatpush.msra.mxu0 0.0
  %725 = vmatpush.msra.mxu0 0.0
  %726 = vmatpush.msra.mxu0 0.0
  %727 = vmatpush.msra.mxu0 0.0
  %728 = vmatpush.msra.mxu0 0.0
  %729 = vmatpush.msra.mxu0 0.0
  %730 = vmatpush.msra.mxu0 %v714
  %731 = vmatpush.msra.mxu0 %v713
  %732 = vmatpush.msra.mxu0 %v712
  %733 = vmatpush.msra.mxu0 %v711
  %734 = vmatmul.f32.gmra.mxu0 %v716
  %v735 = vpop.f32.mrf.mxu0
  %v736 = vadd.f32 0.0, %v735
  %737 = vdwg.mxu0
  %v738 = vadd.f32 %v710, %v736
  %v739 = vld [vmem:[%s3 + $0x140] sm:$0xff]
  %v740 = vld [vmem:[%s3 + $0x148] sm:$0xff]
  %v741 = vld [vmem:[%s3 + $0x150] sm:$0xff]
  %v742 = vld [vmem:[%s3 + $0x158] sm:$0xff]
  %v744 = vsel %vm468, %v454, 0
  %746 = vmatpush.msra.mxu0 0.0
  %747 = vmatpush.msra.mxu0 0.0
  %748 = vmatpush.msra.mxu0 0.0
  %749 = vmatpush.msra.mxu0 0.0
  %750 = vmatpush.msra.mxu0 0.0
  %751 = vmatpush.msra.mxu0 0.0
  %752 = vmatpush.msra.mxu0 0.0
  %753 = vmatpush.msra.mxu0 0.0
  %754 = vmatpush.msra.mxu0 0.0
  %755 = vmatpush.msra.mxu0 0.0
  %756 = vmatpush.msra.mxu0 0.0
  %757 = vmatpush.msra.mxu0 0.0
  %758 = vmatpush.msra.mxu0 %v742
  %759 = vmatpush.msra.mxu0 %v741
  %760 = vmatpush.msra.mxu0 %v740
  %761 = vmatpush.msra.mxu0 %v739
  %762 = vmatmul.f32.gmra.mxu0 %v744
  %v763 = vpop.f32.mrf.mxu0
  %v764 = vadd.f32 0.0, %v763
  %765 = vdwg.mxu0
  %v766 = vadd.f32 %v738, %v764
  %v767 = vld [vmem:[%s3 + $0x160] sm:$0xff]
  %v768 = vld [vmem:[%s3 + $0x168] sm:$0xff]
  %v769 = vld [vmem:[%s3 + $0x170] sm:$0xff]
  %v770 = vld [vmem:[%s3 + $0x178] sm:$0xff]
  %v772 = vsel %vm468, %v455, 0
  %774 = vmatpush.msra.mxu0 0.0
  %775 = vmatpush.msra.mxu0 0.0
  %776 = vmatpush.msra.mxu0 0.0
  %777 = vmatpush.msra.mxu0 0.0
  %778 = vmatpush.msra.mxu0 0.0
  %779 = vmatpush.msra.mxu0 0.0
  %780 = vmatpush.msra.mxu0 0.0
  %781 = vmatpush.msra.mxu0 0.0
  %782 = vmatpush.msra.mxu0 0.0
  %783 = vmatpush.msra.mxu0 0.0
  %784 = vmatpush.msra.mxu0 0.0
  %785 = vmatpush.msra.mxu0 0.0
  %786 = vmatpush.msra.mxu0 %v770
  %787 = vmatpush.msra.mxu0 %v769
  %788 = vmatpush.msra.mxu0 %v768
  %789 = vmatpush.msra.mxu0 %v767
  %790 = vmatmul.f32.gmra.mxu0 %v772
  %v791 = vpop.f32.mrf.mxu0
  %v792 = vadd.f32 0.0, %v791
  %793 = vdwg.mxu0
  %v794 = vadd.f32 %v766, %v792
  %v795 = vld [vmem:[%s3 + $0x180] sm:$0xff]
  %v796 = vld [vmem:[%s3 + $0x188] sm:$0xff]
  %v797 = vld [vmem:[%s3 + $0x190] sm:$0xff]
  %v798 = vld [vmem:[%s3 + $0x198] sm:$0xff]
  %v800 = vsel %vm468, %v456, 0
  %802 = vmatpush.msra.mxu0 0.0
  %803 = vmatpush.msra.mxu0 0.0
  %804 = vmatpush.msra.mxu0 0.0
  %805 = vmatpush.msra.mxu0 0.0
  %806 = vmatpush.msra.mxu0 0.0
  %807 = vmatpush.msra.mxu0 0.0
  %808 = vmatpush.msra.mxu0 0.0
  %809 = vmatpush.msra.mxu0 0.0
  %810 = vmatpush.msra.mxu0 0.0
  %811 = vmatpush.msra.mxu0 0.0
  %812 = vmatpush.msra.mxu0 0.0
  %813 = vmatpush.msra.mxu0 0.0
  %814 = vmatpush.msra.mxu0 %v798
  %815 = vmatpush.msra.mxu0 %v797
  %816 = vmatpush.msra.mxu0 %v796
  %817 = vmatpush.msra.mxu0 %v795
  %818 = vmatmul.f32.gmra.mxu0 %v800
  %v819 = vpop.f32.mrf.mxu0
  %v820 = vadd.f32 0.0, %v819
  %821 = vdwg.mxu0
  %v822 = vadd.f32 %v794, %v820
  %v823 = vld [vmem:[%s3 + $0x1a0] sm:$0xff]
  %v824 = vld [vmem:[%s3 + $0x1a8] sm:$0xff]
  %v825 = vld [vmem:[%s3 + $0x1b0] sm:$0xff]
  %v826 = vld [vmem:[%s3 + $0x1b8] sm:$0xff]
  %v828 = vsel %vm468, %v457, 0
  %830 = vmatpush.msra.mxu0 0.0
  %831 = vmatpush.msra.mxu0 0.0
  %832 = vmatpush.msra.mxu0 0.0
  %833 = vmatpush.msra.mxu0 0.0
  %834 = vmatpush.msra.mxu0 0.0
  %835 = vmatpush.msra.mxu0 0.0
  %836 = vmatpush.msra.mxu0 0.0
  %837 = vmatpush.msra.mxu0 0.0
  %838 = vmatpush.msra.mxu0 0.0
  %839 = vmatpush.msra.mxu0 0.0
  %840 = vmatpush.msra.mxu0 0.0
  %841 = vmatpush.msra.mxu0 0.0
  %842 = vmatpush.msra.mxu0 %v826
  %843 = vmatpush.msra.mxu0 %v825
  %844 = vmatpush.msra.mxu0 %v824
  %845 = vmatpush.msra.mxu0 %v823
  %846 = vmatmul.f32.gmra.mxu0 %v828
  %v847 = vpop.f32.mrf.mxu0
  %v848 = vadd.f32 0.0, %v847
  %849 = vdwg.mxu0
  %v850 = vadd.f32 %v822, %v848
  %v851 = vld [vmem:[%s3 + $0x1c0] sm:$0xff]
  %v852 = vld [vmem:[%s3 + $0x1c8] sm:$0xff]
  %v853 = vld [vmem:[%s3 + $0x1d0] sm:$0xff]
  %v854 = vld [vmem:[%s3 + $0x1d8] sm:$0xff]
  %v856 = vsel %vm468, %v458, 0
  %858 = vmatpush.msra.mxu0 0.0
  %859 = vmatpush.msra.mxu0 0.0
  %860 = vmatpush.msra.mxu0 0.0
  %861 = vmatpush.msra.mxu0 0.0
  %862 = vmatpush.msra.mxu0 0.0
  %863 = vmatpush.msra.mxu0 0.0
  %864 = vmatpush.msra.mxu0 0.0
  %865 = vmatpush.msra.mxu0 0.0
  %866 = vmatpush.msra.mxu0 0.0
  %867 = vmatpush.msra.mxu0 0.0
  %868 = vmatpush.msra.mxu0 0.0
  %869 = vmatpush.msra.mxu0 0.0
  %870 = vmatpush.msra.mxu0 %v854
  %871 = vmatpush.msra.mxu0 %v853
  %872 = vmatpush.msra.mxu0 %v852
  %873 = vmatpush.msra.mxu0 %v851
  %874 = vmatmul.f32.gmra.mxu0 %v856
  %v875 = vpop.f32.mrf.mxu0
  %v876 = vadd.f32 0.0, %v875
  %877 = vdwg.mxu0
  %v878 = vadd.f32 %v850, %v876
  %v879 = vld [vmem:[%s3 + $0x1e0] sm:$0xff]
  %v880 = vld [vmem:[%s3 + $0x1e8] sm:$0xff]
  %v881 = vld [vmem:[%s3 + $0x1f0] sm:$0xff]
  %v882 = vld [vmem:[%s3 + $0x1f8] sm:$0xff]
  %v884 = vsel %vm468, %v459, 0
  %886 = vmatpush.msra.mxu0 0.0
  %887 = vmatpush.msra.mxu0 0.0
  %888 = vmatpush.msra.mxu0 0.0
  %889 = vmatpush.msra.mxu0 0.0
  %890 = vmatpush.msra.mxu0 0.0
  %891 = vmatpush.msra.mxu0 0.0
  %892 = vmatpush.msra.mxu0 0.0
  %893 = vmatpush.msra.mxu0 0.0
  %894 = vmatpush.msra.mxu0 0.0
  %895 = vmatpush.msra.mxu0 0.0
  %896 = vmatpush.msra.mxu0 0.0
  %897 = vmatpush.msra.mxu0 0.0
  %898 = vmatpush.msra.mxu0 %v882
  %899 = vmatpush.msra.mxu0 %v881
  %900 = vmatpush.msra.mxu0 %v880
  %901 = vmatpush.msra.mxu0 %v879
  %902 = vmatmul.f32.gmra.mxu0 %v884
  %v903 = vpop.f32.mrf.mxu0
  %v904 = vadd.f32 0.0, %v903
  %905 = vdwg.mxu0
  %v906 = vadd.f32 %v878, %v904
  %v907 = vld [vmem:[%s4] sm:$0x1]
  %v909 = vperm.slane %v907, 0
  %v911 = vadd.f32 %v906, %v909
  %912 = vst [vmem:[%s5] sm:$0xff] %v911
  // Predicated region
  $region22: #{d_get_logits_forward.1} parent=0 // pred_check
    _
  $region23: #{d_get_logits_forward.1} parent=0 // pred_check_branch
    %914 = sbr.rel (0) target = $region25
  $region24: #{d_get_logits_forward.1} parent=0 // pred_region
    _
  $region25: #{d_get_logits_forward.1} parent=0 // pred_fallthru
    _
  // Predicated region
  $region26: #{d_get_logits_forward.1} parent=0 // pred_check
    _
  $region27: #{d_get_logits_forward.1} parent=0 // pred_check_branch
    %916 = sbr.rel (0) target = $region29
  $region28: #{d_get_logits_forward.1} parent=0 // pred_region
    _
  $region29: #{d_get_logits_forward.1} parent=0 // pred_fallthru
    _

</llo_original>
